<compile_context>
chip_gen: v6e
topology: v6e:2x2x1
jax: 0.10.0
libtpu: 0.0.40
codegen_flags: <defaults>
</compile_context>

<pallas_src>
import functools

import jax
import jax.numpy as jnp
from jax.experimental import pallas as pl
from jax.experimental.pallas import tpu as pltpu


def _lstm_kernel(x2d_ref, wx_ref, wh_ref, b_ref, wfc_ref, bfc_ref, y2d_ref,
                 *, seq_len, batch_pad, hidden, out_size):
    S, B, H, O = seq_len, batch_pad, hidden, out_size

    # ---- Prologue: input projection for ALL timesteps in one bf16 MXU matmul.
    # (S*B, I)bf16 @ (I, 4H)bf16 -> f32 accumulate, + (b_ih + b_hh).
    # Gate order along the 4H axis is PyTorch's [i, f, g, o].
    gates_x = (jnp.dot(x2d_ref[...], wx_ref[...],
                       preferred_element_type=jnp.float32) + b_ref[...])

    w_hh = wh_ref[...]                        # (H, 4H) bf16, loop-invariant

    h = jnp.zeros((B, H), jnp.float32)
    c = jnp.zeros((B, H), jnp.float32)
    hs = []

    # ---- Serial recurrence: fully unrolled, h/c live in vregs.
    # B == 8 (padded) makes every slice below start at a sublane-aligned
    # offset and cover full sublanes.
    for t in range(S):
        gates = gates_x[t * B:(t + 1) * B, :] + jnp.dot(
            h.astype(jnp.bfloat16), w_hh, preferred_element_type=jnp.float32)

        # One sigmoid + one tanh over the whole (B, 4H) tile, then slice.
        sig = jax.nn.sigmoid(gates)
        tnh = jnp.tanh(gates)
        i_g = sig[:, 0 * H:1 * H]
        f_g = sig[:, 1 * H:2 * H]
        g_g = tnh[:, 2 * H:3 * H]
        o_g = sig[:, 3 * H:4 * H]

        # Cell/state updates stay in f32 (fast path on v5e, accuracy everywhere).
        c = f_g * c + i_g * g_g
        h = o_g * jnp.tanh(c)
        hs.append(h)

    # All hidden states stay in vregs — no VMEM scratch, no masked per-step vst.
    h_all = jnp.concatenate(hs, axis=0)                  # (S*B, H) f32

    # ---- Epilogue: Linear head over all timesteps at once.
    if O == 1:
        # N=1 matmul would use a single MXU column and emit 1-lane stores;
        # do it on the VPU + one lane reduction instead.
        y = (jnp.sum(h_all * wfc_ref[...], axis=-1, keepdims=True)
             + bfc_ref[...])
    else:
        y = (jnp.dot(h_all.astype(jnp.bfloat16), wfc_ref[...],
                     preferred_element_type=jnp.float32) + bfc_ref[...])
    y2d_ref[...] = y


def lstm_rnn_forward(x, w_ih, w_hh, b_ih, b_hh, w_fc, b_fc):
    """x: (S, B, I) f32.  w_ih: (4H, I), w_hh: (4H, H), b_*: (4H,),
    w_fc: (O, H), b_fc: (O,).  Returns (S, B, O) — same as LstmRNN.forward."""
    S, B, I = x.shape
    H = w_hh.shape[1]
    O = w_fc.shape[0]

    # Pad the batch up to the f32 sublane tile (8): zero rows run through the
    # recurrence independently and are sliced off after the call.
    B_pad = max(8, ((B + 7) // 8) * 8)
    x = jnp.asarray(x, jnp.float32)
    if B_pad != B:
        x = jnp.pad(x, ((0, 0), (0, B_pad - B), (0, 0)))

    # MXU operands in bf16 (native MXU dtype); everything else stays f32.
    x2d = x.reshape(S * B_pad, I).astype(jnp.bfloat16)              # (S*B, I)
    wx = jnp.asarray(w_ih, jnp.float32).T.astype(jnp.bfloat16)      # (I, 4H)
    wh = jnp.asarray(w_hh, jnp.float32).T.astype(jnp.bfloat16)      # (H, 4H)
    b = (jnp.asarray(b_ih, jnp.float32)
         + jnp.asarray(b_hh, jnp.float32))[None, :]                  # (1, 4H)
    if O == 1:
        wfc = jnp.asarray(w_fc, jnp.float32)                         # (1, H) VPU
    else:
        wfc = jnp.asarray(w_fc, jnp.float32).T.astype(jnp.bfloat16)  # (H, O) MXU
    bfc = jnp.asarray(b_fc, jnp.float32)[None, :]                    # (1, O)

    kernel = functools.partial(_lstm_kernel, seq_len=S, batch_pad=B_pad,
                               hidden=H, out_size=O)

    cost = pl.CostEstimate(
        flops=2 * S * B_pad * (I * 4 * H + H * 4 * H) + 2 * S * B_pad * H * O,
        transcendentals=5 * S * B_pad * H,
        bytes_accessed=(x2d.size * 2 + wx.size * 2 + wh.size * 2 + b.size * 4
                        + wfc.size * wfc.dtype.itemsize + bfc.size * 4
                        + S * B_pad * O * 4),
    )

    y2d = pl.pallas_call(
        kernel,
        out_shape=jax.ShapeDtypeStruct((S * B_pad, O), jnp.float32),
        # Single gridless invocation: every operand is VMEM-resident for the
        # whole kernel, loaded exactly once; no per-step double-buffer DMAs.
        in_specs=[pl.BlockSpec(memory_space=pltpu.MemorySpace.VMEM)] * 6,
        out_specs=pl.BlockSpec(memory_space=pltpu.MemorySpace.VMEM),
        compiler_params=pltpu.CompilerParams(
            # Residency here is tiny (<1 MiB); limit kept well inside v7x's
            # 64 MiB physical VMEM.  See TODO above for tiling S when
            # S*B_pad*(4H + H + I)*4B approaches tens of MiB.
            vmem_limit_bytes=16 * 1024 * 1024),
        cost_estimate=cost,
    )(x2d, wx, wh, b, wfc, bfc)

    return y2d.reshape(S, B_pad, O)[:, :B, :]


def lstm_rnn_reference(x, w_ih, w_hh, b_ih, b_hh, w_fc, b_fc):
    """Pure-JAX f32 reference matching PyTorch nn.LSTM(num_layers=1) + nn.Linear."""
    S, B, I = x.shape
    H = w_hh.shape[1]

    def step(carry, x_t):
        h, c = carry
        gates = x_t @ w_ih.T + b_ih + h @ w_hh.T + b_hh
        i_g = jax.nn.sigmoid(gates[:, 0 * H:1 * H])
        f_g = jax.nn.sigmoid(gates[:, 1 * H:2 * H])
        g_g = jnp.tanh(gates[:, 2 * H:3 * H])
        o_g = jax.nn.sigmoid(gates[:, 3 * H:4 * H])
        c_new = f_g * c + i_g * g_g
        h_new = o_g * jnp.tanh(c_new)
        return (h_new, c_new), h_new

    h0 = jnp.zeros((B, H), jnp.float32)
    c0 = jnp.zeros((B, H), jnp.float32)
    _, hs = jax.lax.scan(step, (h0, c0), x)              # (S, B, H)
    y = hs.reshape(S * B, H) @ w_fc.T + b_fc
    return y.reshape(S, B, -1)


if __name__ == "__main__":
    # Small but representative config (module defaults would be hidden=output=1).
    INPUT_SIZE, HIDDEN_SIZE, OUTPUT_SIZE = 4, 32, 1
    SEQ_LEN, BATCH = 8, 2

    key = jax.random.PRNGKey(0)
    k_x, k_wih, k_whh, k_bih, k_bhh, k_wfc, k_bfc = jax.random.split(key, 7)

    # PyTorch-style uniform(-1/sqrt(H), 1/sqrt(H)) init, deterministic.
    bound = 1.0 / jnp.sqrt(jnp.float32(HIDDEN_SIZE))
    u = lambda k, shape: jax.random.uniform(k, shape, jnp.float32, -bound, bound)

    w_ih = u(k_wih, (4 * HIDDEN_SIZE, INPUT_SIZE))
    w_hh = u(k_whh, (4 * HIDDEN_SIZE, HIDDEN_SIZE))
    b_ih = u(k_bih, (4 * HIDDEN_SIZE,))
    b_hh = u(k_bhh, (4 * HIDDEN_SIZE,))
    w_fc = u(k_wfc, (OUTPUT_SIZE, HIDDEN_SIZE))
    b_fc = u(k_bfc, (OUTPUT_SIZE,))

    x = jax.random.normal(k_x, (SEQ_LEN, BATCH, INPUT_SIZE), jnp.float32)

    y = lstm_rnn_forward(x, w_ih, w_hh, b_ih, b_hh, w_fc, b_fc)
    y = jax.block_until_ready(y)

    y_ref = lstm_rnn_reference(x, w_ih, w_hh, b_ih, b_hh, w_fc, b_fc)
    assert y.shape == (SEQ_LEN, BATCH, OUTPUT_SIZE)
    # bf16 MXU operands (f32 accumulate, f32 elementwise) loosen the match vs
    # the pure-f32 reference from 1e-5 to ~1e-2; observed error is ~1e-3.
    assert jnp.allclose(y, y_ref, atol=5e-2, rtol=5e-2), "mismatch vs reference"

    print("KERNEL_OK")
</pallas_src>

<mosaic_0001>
module attributes {stable_mosaic.version = 11 : i64} {
  func.func @_lstm_kernel(%arg0: memref<64x4xbf16, #tpu.memory_space<vmem>>, %arg1: memref<4x128xbf16, #tpu.memory_space<vmem>>, %arg2: memref<32x128xbf16, #tpu.memory_space<vmem>>, %arg3: memref<1x128xf32, #tpu.memory_space<vmem>>, %arg4: memref<1x32xf32, #tpu.memory_space<vmem>>, %arg5: memref<1x1xf32, #tpu.memory_space<vmem>>, %arg6: memref<64x1xf32, #tpu.memory_space<vmem>>) attributes {dimension_semantics = [], scalar_prefetch = 0 : i64, scratch_operands = 0 : i64, tpu.core_type = #tpu.core_type<tc>} {
    %c0 = arith.constant 0 : index
    %c0_0 = arith.constant 0 : index
    %0 = vector.load %arg0[%c0, %c0_0] : memref<64x4xbf16, #tpu.memory_space<vmem>>, vector<64x4xbf16>
    %c0_1 = arith.constant 0 : index
    %c0_2 = arith.constant 0 : index
    %1 = vector.load %arg1[%c0_1, %c0_2] : memref<4x128xbf16, #tpu.memory_space<vmem>>, vector<4x128xbf16>
    %cst = arith.constant dense<0.000000e+00> : vector<64x128xf32>
    %2 = tpu.matmul %0, %1, %cst {dimension_numbers = #tpu.dot_dimension_numbers<[1], [0], [0], [1], [0, 0, 1, 1], [], []>} : vector<64x4xbf16>, vector<4x128xbf16>, vector<64x128xf32> -> vector<64x128xf32>
    %c0_3 = arith.constant 0 : index
    %c0_4 = arith.constant 0 : index
    %3 = vector.load %arg3[%c0_3, %c0_4] : memref<1x128xf32, #tpu.memory_space<vmem>>, vector<1x128xf32>
    %4 = vector.broadcast %3 : vector<1x128xf32> to vector<64x128xf32>
    %5 = arith.addf %2, %4 : vector<64x128xf32>
    %c0_5 = arith.constant 0 : index
    %c0_6 = arith.constant 0 : index
    %6 = vector.load %arg2[%c0_5, %c0_6] : memref<32x128xbf16, #tpu.memory_space<vmem>>, vector<32x128xbf16>
    %cst_7 = arith.constant 0.000000e+00 : f32
    %7 = vector.broadcast %cst_7 : f32 to vector<8x32xf32>
    %cst_8 = arith.constant 0.000000e+00 : f32
    %8 = vector.broadcast %cst_8 : f32 to vector<8x32xf32>
    %9 = vector.extract_strided_slice %5 {offsets = [0, 0], sizes = [8, 128], strides = [1, 1]} : vector<64x128xf32> to vector<8x128xf32>
    %10 = arith.truncf %7 : vector<8x32xf32> to vector<8x32xbf16>
    %cst_9 = arith.constant dense<0.000000e+00> : vector<8x128xf32>
    %11 = tpu.matmul %10, %6, %cst_9 {dimension_numbers = #tpu.dot_dimension_numbers<[1], [0], [0], [1], [0, 0, 1, 1], [], []>} : vector<8x32xbf16>, vector<32x128xbf16>, vector<8x128xf32> -> vector<8x128xf32>
    %12 = arith.addf %9, %11 : vector<8x128xf32>
    %13 = arith.negf %12 : vector<8x128xf32>
    %14 = math.exp %13 : vector<8x128xf32>
    %cst_10 = arith.constant 1.000000e+00 : f32
    %15 = vector.broadcast %cst_10 : f32 to vector<8x128xf32>
    %16 = arith.addf %15, %14 : vector<8x128xf32>
    %17 = arith.divf %15, %16 : vector<8x128xf32>
    %18 = math.tanh %12 : vector<8x128xf32>
    %19 = vector.extract_strided_slice %17 {offsets = [0, 0], sizes = [8, 32], strides = [1, 1]} : vector<8x128xf32> to vector<8x32xf32>
    %20 = vector.extract_strided_slice %17 {offsets = [0, 32], sizes = [8, 32], strides = [1, 1]} : vector<8x128xf32> to vector<8x32xf32>
    %21 = vector.extract_strided_slice %18 {offsets = [0, 64], sizes = [8, 32], strides = [1, 1]} : vector<8x128xf32> to vector<8x32xf32>
    %22 = vector.extract_strided_slice %17 {offsets = [0, 96], sizes = [8, 32], strides = [1, 1]} : vector<8x128xf32> to vector<8x32xf32>
    %23 = arith.mulf %20, %8 : vector<8x32xf32>
    %24 = arith.mulf %19, %21 : vector<8x32xf32>
    %25 = arith.addf %23, %24 : vector<8x32xf32>
    %26 = math.tanh %25 : vector<8x32xf32>
    %27 = arith.mulf %22, %26 : vector<8x32xf32>
    %28 = vector.extract_strided_slice %5 {offsets = [8, 0], sizes = [8, 128], strides = [1, 1]} : vector<64x128xf32> to vector<8x128xf32>
    %29 = arith.truncf %27 : vector<8x32xf32> to vector<8x32xbf16>
    %cst_11 = arith.constant dense<0.000000e+00> : vector<8x128xf32>
    %30 = tpu.matmul %29, %6, %cst_11 {dimension_numbers = #tpu.dot_dimension_numbers<[1], [0], [0], [1], [0, 0, 1, 1], [], []>} : vector<8x32xbf16>, vector<32x128xbf16>, vector<8x128xf32> -> vector<8x128xf32>
    %31 = arith.addf %28, %30 : vector<8x128xf32>
    %32 = arith.negf %31 : vector<8x128xf32>
    %33 = math.exp %32 : vector<8x128xf32>
    %cst_12 = arith.constant 1.000000e+00 : f32
    %34 = vector.broadcast %cst_12 : f32 to vector<8x128xf32>
    %35 = arith.addf %34, %33 : vector<8x128xf32>
    %36 = arith.divf %34, %35 : vector<8x128xf32>
    %37 = math.tanh %31 : vector<8x128xf32>
    %38 = vector.extract_strided_slice %36 {offsets = [0, 0], sizes = [8, 32], strides = [1, 1]} : vector<8x128xf32> to vector<8x32xf32>
    %39 = vector.extract_strided_slice %36 {offsets = [0, 32], sizes = [8, 32], strides = [1, 1]} : vector<8x128xf32> to vector<8x32xf32>
    %40 = vector.extract_strided_slice %37 {offsets = [0, 64], sizes = [8, 32], strides = [1, 1]} : vector<8x128xf32> to vector<8x32xf32>
    %41 = vector.extract_strided_slice %36 {offsets = [0, 96], sizes = [8, 32], strides = [1, 1]} : vector<8x128xf32> to vector<8x32xf32>
    %42 = arith.mulf %39, %25 : vector<8x32xf32>
    %43 = arith.mulf %38, %40 : vector<8x32xf32>
    %44 = arith.addf %42, %43 : vector<8x32xf32>
    %45 = math.tanh %44 : vector<8x32xf32>
    %46 = arith.mulf %41, %45 : vector<8x32xf32>
    %47 = vector.extract_strided_slice %5 {offsets = [16, 0], sizes = [8, 128], strides = [1, 1]} : vector<64x128xf32> to vector<8x128xf32>
    %48 = arith.truncf %46 : vector<8x32xf32> to vector<8x32xbf16>
    %cst_13 = arith.constant dense<0.000000e+00> : vector<8x128xf32>
    %49 = tpu.matmul %48, %6, %cst_13 {dimension_numbers = #tpu.dot_dimension_numbers<[1], [0], [0], [1], [0, 0, 1, 1], [], []>} : vector<8x32xbf16>, vector<32x128xbf16>, vector<8x128xf32> -> vector<8x128xf32>
    %50 = arith.addf %47, %49 : vector<8x128xf32>
    %51 = arith.negf %50 : vector<8x128xf32>
    %52 = math.exp %51 : vector<8x128xf32>
    %cst_14 = arith.constant 1.000000e+00 : f32
    %53 = vector.broadcast %cst_14 : f32 to vector<8x128xf32>
    %54 = arith.addf %53, %52 : vector<8x128xf32>
    %55 = arith.divf %53, %54 : vector<8x128xf32>
    %56 = math.tanh %50 : vector<8x128xf32>
    %57 = vector.extract_strided_slice %55 {offsets = [0, 0], sizes = [8, 32], strides = [1, 1]} : vector<8x128xf32> to vector<8x32xf32>
    %58 = vector.extract_strided_slice %55 {offsets = [0, 32], sizes = [8, 32], strides = [1, 1]} : vector<8x128xf32> to vector<8x32xf32>
    %59 = vector.extract_strided_slice %56 {offsets = [0, 64], sizes = [8, 32], strides = [1, 1]} : vector<8x128xf32> to vector<8x32xf32>
    %60 = vector.extract_strided_slice %55 {offsets = [0, 96], sizes = [8, 32], strides = [1, 1]} : vector<8x128xf32> to vector<8x32xf32>
    %61 = arith.mulf %58, %44 : vector<8x32xf32>
    %62 = arith.mulf %57, %59 : vector<8x32xf32>
    %63 = arith.addf %61, %62 : vector<8x32xf32>
    %64 = math.tanh %63 : vector<8x32xf32>
    %65 = arith.mulf %60, %64 : vector<8x32xf32>
    %66 = vector.extract_strided_slice %5 {offsets = [24, 0], sizes = [8, 128], strides = [1, 1]} : vector<64x128xf32> to vector<8x128xf32>
    %67 = arith.truncf %65 : vector<8x32xf32> to vector<8x32xbf16>
    %cst_15 = arith.constant dense<0.000000e+00> : vector<8x128xf32>
    %68 = tpu.matmul %67, %6, %cst_15 {dimension_numbers = #tpu.dot_dimension_numbers<[1], [0], [0], [1], [0, 0, 1, 1], [], []>} : vector<8x32xbf16>, vector<32x128xbf16>, vector<8x128xf32> -> vector<8x128xf32>
    %69 = arith.addf %66, %68 : vector<8x128xf32>
    %70 = arith.negf %69 : vector<8x128xf32>
    %71 = math.exp %70 : vector<8x128xf32>
    %cst_16 = arith.constant 1.000000e+00 : f32
    %72 = vector.broadcast %cst_16 : f32 to vector<8x128xf32>
    %73 = arith.addf %72, %71 : vector<8x128xf32>
    %74 = arith.divf %72, %73 : vector<8x128xf32>
    %75 = math.tanh %69 : vector<8x128xf32>
    %76 = vector.extract_strided_slice %74 {offsets = [0, 0], sizes = [8, 32], strides = [1, 1]} : vector<8x128xf32> to vector<8x32xf32>
    %77 = vector.extract_strided_slice %74 {offsets = [0, 32], sizes = [8, 32], strides = [1, 1]} : vector<8x128xf32> to vector<8x32xf32>
    %78 = vector.extract_strided_slice %75 {offsets = [0, 64], sizes = [8, 32], strides = [1, 1]} : vector<8x128xf32> to vector<8x32xf32>
    %79 = vector.extract_strided_slice %74 {offsets = [0, 96], sizes = [8, 32], strides = [1, 1]} : vector<8x128xf32> to vector<8x32xf32>
    %80 = arith.mulf %77, %63 : vector<8x32xf32>
    %81 = arith.mulf %76, %78 : vector<8x32xf32>
    %82 = arith.addf %80, %81 : vector<8x32xf32>
    %83 = math.tanh %82 : vector<8x32xf32>
    %84 = arith.mulf %79, %83 : vector<8x32xf32>
    %85 = vector.extract_strided_slice %5 {offsets = [32, 0], sizes = [8, 128], strides = [1, 1]} : vector<64x128xf32> to vector<8x128xf32>
    %86 = arith.truncf %84 : vector<8x32xf32> to vector<8x32xbf16>
    %cst_17 = arith.constant dense<0.000000e+00> : vector<8x128xf32>
    %87 = tpu.matmul %86, %6, %cst_17 {dimension_numbers = #tpu.dot_dimension_numbers<[1], [0], [0], [1], [0, 0, 1, 1], [], []>} : vector<8x32xbf16>, vector<32x128xbf16>, vector<8x128xf32> -> vector<8x128xf32>
    %88 = arith.addf %85, %87 : vector<8x128xf32>
    %89 = arith.negf %88 : vector<8x128xf32>
    %90 = math.exp %89 : vector<8x128xf32>
    %cst_18 = arith.constant 1.000000e+00 : f32
    %91 = vector.broadcast %cst_18 : f32 to vector<8x128xf32>
    %92 = arith.addf %91, %90 : vector<8x128xf32>
    %93 = arith.divf %91, %92 : vector<8x128xf32>
    %94 = math.tanh %88 : vector<8x128xf32>
    %95 = vector.extract_strided_slice %93 {offsets = [0, 0], sizes = [8, 32], strides = [1, 1]} : vector<8x128xf32> to vector<8x32xf32>
    %96 = vector.extract_strided_slice %93 {offsets = [0, 32], sizes = [8, 32], strides = [1, 1]} : vector<8x128xf32> to vector<8x32xf32>
    %97 = vector.extract_strided_slice %94 {offsets = [0, 64], sizes = [8, 32], strides = [1, 1]} : vector<8x128xf32> to vector<8x32xf32>
    %98 = vector.extract_strided_slice %93 {offsets = [0, 96], sizes = [8, 32], strides = [1, 1]} : vector<8x128xf32> to vector<8x32xf32>
    %99 = arith.mulf %96, %82 : vector<8x32xf32>
    %100 = arith.mulf %95, %97 : vector<8x32xf32>
    %101 = arith.addf %99, %100 : vector<8x32xf32>
    %102 = math.tanh %101 : vector<8x32xf32>
    %103 = arith.mulf %98, %102 : vector<8x32xf32>
    %104 = vector.extract_strided_slice %5 {offsets = [40, 0], sizes = [8, 128], strides = [1, 1]} : vector<64x128xf32> to vector<8x128xf32>
    %105 = arith.truncf %103 : vector<8x32xf32> to vector<8x32xbf16>
    %cst_19 = arith.constant dense<0.000000e+00> : vector<8x128xf32>
    %106 = tpu.matmul %105, %6, %cst_19 {dimension_numbers = #tpu.dot_dimension_numbers<[1], [0], [0], [1], [0, 0, 1, 1], [], []>} : vector<8x32xbf16>, vector<32x128xbf16>, vector<8x128xf32> -> vector<8x128xf32>
    %107 = arith.addf %104, %106 : vector<8x128xf32>
    %108 = arith.negf %107 : vector<8x128xf32>
    %109 = math.exp %108 : vector<8x128xf32>
    %cst_20 = arith.constant 1.000000e+00 : f32
    %110 = vector.broadcast %cst_20 : f32 to vector<8x128xf32>
    %111 = arith.addf %110, %109 : vector<8x128xf32>
    %112 = arith.divf %110, %111 : vector<8x128xf32>
    %113 = math.tanh %107 : vector<8x128xf32>
    %114 = vector.extract_strided_slice %112 {offsets = [0, 0], sizes = [8, 32], strides = [1, 1]} : vector<8x128xf32> to vector<8x32xf32>
    %115 = vector.extract_strided_slice %112 {offsets = [0, 32], sizes = [8, 32], strides = [1, 1]} : vector<8x128xf32> to vector<8x32xf32>
    %116 = vector.extract_strided_slice %113 {offsets = [0, 64], sizes = [8, 32], strides = [1, 1]} : vector<8x128xf32> to vector<8x32xf32>
    %117 = vector.extract_strided_slice %112 {offsets = [0, 96], sizes = [8, 32], strides = [1, 1]} : vector<8x128xf32> to vector<8x32xf32>
    %118 = arith.mulf %115, %101 : vector<8x32xf32>
    %119 = arith.mulf %114, %116 : vector<8x32xf32>
    %120 = arith.addf %118, %119 : vector<8x32xf32>
    %121 = math.tanh %120 : vector<8x32xf32>
    %122 = arith.mulf %117, %121 : vector<8x32xf32>
    %123 = vector.extract_strided_slice %5 {offsets = [48, 0], sizes = [8, 128], strides = [1, 1]} : vector<64x128xf32> to vector<8x128xf32>
    %124 = arith.truncf %122 : vector<8x32xf32> to vector<8x32xbf16>
    %cst_21 = arith.constant dense<0.000000e+00> : vector<8x128xf32>
    %125 = tpu.matmul %124, %6, %cst_21 {dimension_numbers = #tpu.dot_dimension_numbers<[1], [0], [0], [1], [0, 0, 1, 1], [], []>} : vector<8x32xbf16>, vector<32x128xbf16>, vector<8x128xf32> -> vector<8x128xf32>
    %126 = arith.addf %123, %125 : vector<8x128xf32>
    %127 = arith.negf %126 : vector<8x128xf32>
    %128 = math.exp %127 : vector<8x128xf32>
    %cst_22 = arith.constant 1.000000e+00 : f32
    %129 = vector.broadcast %cst_22 : f32 to vector<8x128xf32>
    %130 = arith.addf %129, %128 : vector<8x128xf32>
    %131 = arith.divf %129, %130 : vector<8x128xf32>
    %132 = math.tanh %126 : vector<8x128xf32>
    %133 = vector.extract_strided_slice %131 {offsets = [0, 0], sizes = [8, 32], strides = [1, 1]} : vector<8x128xf32> to vector<8x32xf32>
    %134 = vector.extract_strided_slice %131 {offsets = [0, 32], sizes = [8, 32], strides = [1, 1]} : vector<8x128xf32> to vector<8x32xf32>
    %135 = vector.extract_strided_slice %132 {offsets = [0, 64], sizes = [8, 32], strides = [1, 1]} : vector<8x128xf32> to vector<8x32xf32>
    %136 = vector.extract_strided_slice %131 {offsets = [0, 96], sizes = [8, 32], strides = [1, 1]} : vector<8x128xf32> to vector<8x32xf32>
    %137 = arith.mulf %134, %120 : vector<8x32xf32>
    %138 = arith.mulf %133, %135 : vector<8x32xf32>
    %139 = arith.addf %137, %138 : vector<8x32xf32>
    %140 = math.tanh %139 : vector<8x32xf32>
    %141 = arith.mulf %136, %140 : vector<8x32xf32>
    %142 = vector.extract_strided_slice %5 {offsets = [56, 0], sizes = [8, 128], strides = [1, 1]} : vector<64x128xf32> to vector<8x128xf32>
    %143 = arith.truncf %141 : vector<8x32xf32> to vector<8x32xbf16>
    %cst_23 = arith.constant dense<0.000000e+00> : vector<8x128xf32>
    %144 = tpu.matmul %143, %6, %cst_23 {dimension_numbers = #tpu.dot_dimension_numbers<[1], [0], [0], [1], [0, 0, 1, 1], [], []>} : vector<8x32xbf16>, vector<32x128xbf16>, vector<8x128xf32> -> vector<8x128xf32>
    %145 = arith.addf %142, %144 : vector<8x128xf32>
    %146 = arith.negf %145 : vector<8x128xf32>
    %147 = math.exp %146 : vector<8x128xf32>
    %cst_24 = arith.constant 1.000000e+00 : f32
    %148 = vector.broadcast %cst_24 : f32 to vector<8x128xf32>
    %149 = arith.addf %148, %147 : vector<8x128xf32>
    %150 = arith.divf %148, %149 : vector<8x128xf32>
    %151 = math.tanh %145 : vector<8x128xf32>
    %152 = vector.extract_strided_slice %150 {offsets = [0, 0], sizes = [8, 32], strides = [1, 1]} : vector<8x128xf32> to vector<8x32xf32>
    %153 = vector.extract_strided_slice %150 {offsets = [0, 32], sizes = [8, 32], strides = [1, 1]} : vector<8x128xf32> to vector<8x32xf32>
    %154 = vector.extract_strided_slice %151 {offsets = [0, 64], sizes = [8, 32], strides = [1, 1]} : vector<8x128xf32> to vector<8x32xf32>
    %155 = vector.extract_strided_slice %150 {offsets = [0, 96], sizes = [8, 32], strides = [1, 1]} : vector<8x128xf32> to vector<8x32xf32>
    %156 = arith.mulf %153, %139 : vector<8x32xf32>
    %157 = arith.mulf %152, %154 : vector<8x32xf32>
    %158 = arith.addf %156, %157 : vector<8x32xf32>
    %159 = math.tanh %158 : vector<8x32xf32>
    %160 = arith.mulf %155, %159 : vector<8x32xf32>
    %161 = tpu.concatenate %27, %46, %65, %84, %103, %122, %141, %160 in 0 : vector<8x32xf32>, vector<8x32xf32>, vector<8x32xf32>, vector<8x32xf32>, vector<8x32xf32>, vector<8x32xf32>, vector<8x32xf32>, vector<8x32xf32> -> vector<64x32xf32>
    %c0_25 = arith.constant 0 : index
    %c0_26 = arith.constant 0 : index
    %162 = vector.load %arg4[%c0_25, %c0_26] : memref<1x32xf32, #tpu.memory_space<vmem>>, vector<1x32xf32>
    %163 = vector.broadcast %162 : vector<1x32xf32> to vector<64x32xf32>
    %164 = arith.mulf %161, %163 : vector<64x32xf32>
    %cst_27 = arith.constant dense<0.000000e+00> : vector<64xf32>
    %165 = vector.multi_reduction <add>, %164, %cst_27 [1] : vector<64x32xf32> to vector<64xf32>
    %166 = vector.shape_cast %165 : vector<64xf32> to vector<64x1xf32>
    %c0_28 = arith.constant 0 : index
    %c0_29 = arith.constant 0 : index
    %167 = vector.load %arg5[%c0_28, %c0_29] : memref<1x1xf32, #tpu.memory_space<vmem>>, vector<1x1xf32>
    %168 = vector.broadcast %167 : vector<1x1xf32> to vector<64x1xf32>
    %169 = arith.addf %166, %168 : vector<64x1xf32>
    %c0_30 = arith.constant 0 : index
    %c0_31 = arith.constant 0 : index
    %170 = vector.load %arg6[%c0_30, %c0_31] : memref<64x1xf32, #tpu.memory_space<vmem>>, vector<64x1xf32>
    tpu.vector_store %arg6[%c0_30, %c0_31], %169 {strides = array<i32>} : memref<64x1xf32, #tpu.memory_space<vmem>>, vector<64x1xf32>,
    return
  }
}

</mosaic_0001>

<llo_original>
// kernel: tpu_custom_call.1
$region0: #{tpu_custom_call.1}
  #allocation0 [shape = 'u32[]', space=smem, size = 0x4, offset = 0x4, fixed_abs, tag = 'smem constant byte address 0x4 - core index']
  #allocation1 [shape = 'u32[144,128]{1,0:T(1,128)}', space=vmem, size = 0x12000, scoped, tag = 'internal scratch']
  #allocation2 [shape = 'f32[1,1]{1,0:T(1,128)S(1)}', space=vmem, size = 0x200, scoped, tag = 'scoped memory for tpu_custom_call.1']
  %s0 = inlined_call_operand.vmem [shape: bf16[64,4], index: 0, kind: input, shape index: {}]
  %s1 = inlined_call_operand.vmem [shape: bf16[4,128], index: 1, kind: input, shape index: {}]
  %s2 = inlined_call_operand.vmem [shape: bf16[32,128], index: 2, kind: input, shape index: {}]
  %s3 = inlined_call_operand.vmem [shape: f32[1,128], index: 3, kind: input, shape index: {}]
  %s4 = inlined_call_operand.vmem [shape: f32[1,32], index: 4, kind: input, shape index: {}]
  %s5 = inlined_call_operand.<no memory space> [shape: f32[1,1], index: 5, kind: input, shape index: {}]
  %s6 = inlined_call_operand.vmem [shape: f32[64,1], index: 6, kind: output, shape index: {}]
  %s7 = sld [smem:[#allocation0]]
  $region34: #{tpu_custom_call.1} parent=0
    _
  %s9 = ssub.s32 1, %s7
  %s10 = scalar_select 0, %s9, %s7
  %v11 = vstv %s5
  %12 = vst [vmem:[#allocation2] sm:$0x1] %v11
  // Predicated region
  $region2: #{tpu_custom_call.1} parent=0 // pred_check
    _
  $region3: #{tpu_custom_call.1} parent=0 // pred_check_branch
    %14 = sbr.rel (0) target = $region5
  $region4: #{tpu_custom_call.1} parent=0 // pred_region
    _
  $region5: #{tpu_custom_call.1} parent=0 // pred_fallthru
    _
  // Predicated region
  $region6: #{tpu_custom_call.1} parent=0 // pred_check
    _
  $region7: #{tpu_custom_call.1} parent=0 // pred_check_branch
    %16 = sbr.rel (0) target = $region9
  $region8: #{tpu_custom_call.1} parent=0 // pred_region
    _
  $region9: #{tpu_custom_call.1} parent=0 // pred_fallthru
    _
  // Predicated region
  $region10: #{tpu_custom_call.1} parent=0 // pred_check
    _
  $region11: #{tpu_custom_call.1} parent=0 // pred_check_branch
    %18 = sbr.rel (0) target = $region13
  $region12: #{tpu_custom_call.1} parent=0 // pred_region
    _
  $region13: #{tpu_custom_call.1} parent=0 // pred_fallthru
    _
  // Predicated region
  $region14: #{tpu_custom_call.1} parent=0 // pred_check
    _
  $region15: #{tpu_custom_call.1} parent=0 // pred_check_branch
    %20 = sbr.rel (0) target = $region17
  $region16: #{tpu_custom_call.1} parent=0 // pred_region
    _
  $region17: #{tpu_custom_call.1} parent=0 // pred_fallthru
    _
  // Predicated region
  $region18: #{tpu_custom_call.1} parent=0 // pred_check
    _
  $region19: #{tpu_custom_call.1} parent=0 // pred_check_branch
    %22 = sbr.rel (0) target = $region21
  $region20: #{tpu_custom_call.1} parent=0 // pred_region
    _
  $region21: #{tpu_custom_call.1} parent=0 // pred_fallthru
    _
  // Predicated region
  $region22: #{tpu_custom_call.1} parent=0 // pred_check
    _
  $region23: #{tpu_custom_call.1} parent=0 // pred_check_branch
    %24 = sbr.rel (0) target = $region25
  $region24: #{tpu_custom_call.1} parent=0 // pred_region
    _
  $region25: #{tpu_custom_call.1} parent=0 // pred_fallthru
    _
  %v26 = vld [vmem:[%s0] sm:$0xf]
  %v27 = vld [vmem:[%s0 + $0x4] sm:$0xf]
  %v28 = vld [vmem:[%s0 + $0x8] sm:$0xf]
  %v29 = vld [vmem:[%s0 + $0xc] sm:$0xf]
  %v30 = vld [vmem:[%s0 + $0x10] sm:$0xf]
  %v31 = vld [vmem:[%s0 + $0x14] sm:$0xf]
  %v32 = vld [vmem:[%s0 + $0x18] sm:$0xf]
  %v33 = vld [vmem:[%s0 + $0x1c] sm:$0xf]
  %v34 = vld [vmem:[%s1] sm:$0x3]
  %v35 = vld [vmem:[%s3] sm:$0x1]
  %v37 = vlaneseq
  %v38 = vshrl.u32 %v37, 7
  %v39 = vsub.s32 0, %v38
  %v40 = vrot.slane %v35, %v39
  %v50 = vunpack.c.l.b16 %v26
  %v51 = vunpack.c.l.b16 %v27
  %v52 = vunpack.c.l.b16 %v28
  %v53 = vunpack.c.l.b16 %v29
  %v54 = vunpack.c.l.b16 %v30
  %v55 = vunpack.c.l.b16 %v31
  %v56 = vunpack.c.l.b16 %v32
  %v57 = vunpack.c.l.b16 %v33
  %v58 = vpack.c.b16 %v51, %v50
  %v59 = vpack.c.b16 %v53, %v52
  %v60 = vpack.c.b16 %v55, %v54
  %v61 = vpack.c.b16 %v57, %v56
  %vm62 = vcmask 31744
  %v64 = vsel %vm62, %v58, 0
  %v67 = vsel %vm62, %v59, 0
  %v70 = vsel %vm62, %v60, 0
  %v73 = vsel %vm62, %v61, 0
  %vm75 = vcmask 1041408
  %v77 = vsel %vm75, %v34, 0
  %79 = vmatprep.subr.bf16.mxu0 0
  %80 = vmatpush1.bf16.msra.mxu0 0
  %81 = vmatprep.subr.bf16.mxu0 0
  %82 = vmatpush1.bf16.msra.mxu0 0
  %83 = vmatprep.subr.bf16.mxu0 0
  %84 = vmatpush1.bf16.msra.mxu0 0
  %85 = vmatprep.subr.bf16.mxu0 0
  %86 = vmatpush1.bf16.msra.mxu0 0
  %87 = vmatprep.subr.bf16.mxu0 0
  %88 = vmatpush1.bf16.msra.mxu0 0
  %89 = vmatprep.subr.bf16.mxu0 0
  %90 = vmatpush1.bf16.msra.mxu0 0
  %91 = vmatprep.subr.bf16.mxu0 0
  %92 = vmatpush1.bf16.msra.mxu0 0
  %93 = vmatprep.subr.bf16.mxu0 0
  %94 = vmatpush1.bf16.msra.mxu0 %v77
  %95 = vmatprep.subr.bf16.mxu0 0
  %96 = vmatpush2.bf16.msra.mxu0 0
  %97 = vmatprep.subr.bf16.mxu0 0
  %98 = vmatpush2.bf16.msra.mxu0 0
  %99 = vmatprep.subr.bf16.mxu0 0
  %100 = vmatpush2.bf16.msra.mxu0 0
  %101 = vmatprep.subr.bf16.mxu0 0
  %102 = vmatpush2.bf16.msra.mxu0 0
  %103 = vmatprep.subr.bf16.mxu0 0
  %104 = vmatpush2.bf16.msra.mxu0 0
  %105 = vmatprep.subr.bf16.mxu0 0
  %106 = vmatpush2.bf16.msra.mxu0 0
  %107 = vmatprep.subr.bf16.mxu0 0
  %108 = vmatpush2.bf16.msra.mxu0 0
  %109 = vmatprep.subr.bf16.mxu0 0
  %110 = vmatpush2.bf16.msra.mxu0 0
  %111 = vmatprep.mubr.bf16.mxu0 0
  %112 = vmatmul.mubr.bf16.gmra.mxu0 %v64
  %v113 = vpop.f32.mrf.mxu0
  %v114 = vadd.f32 %v40, %v113
  %v115 = vpop.f32.mrf.mxu0
  %v116 = vpop.f32.mrf.mxu0
  %v117 = vadd.f32 %v40, %v116
  %v118 = vpop.f32.mrf.mxu0
  %119 = vmatprep.mubr.bf16.mxu0 0
  %120 = vmatmul.mubr.bf16.gmra.mxu0 %v67
  %v121 = vpop.f32.mrf.mxu0
  %v122 = vadd.f32 %v40, %v121
  %v123 = vpop.f32.mrf.mxu0
  %v124 = vpop.f32.mrf.mxu0
  %v125 = vadd.f32 %v40, %v124
  %v126 = vpop.f32.mrf.mxu0
  %127 = vmatprep.mubr.bf16.mxu0 0
  %128 = vmatmul.mubr.bf16.gmra.mxu0 %v70
  %v129 = vpop.f32.mrf.mxu0
  %v130 = vadd.f32 %v40, %v129
  %v131 = vpop.f32.mrf.mxu0
  %v132 = vpop.f32.mrf.mxu0
  %v133 = vadd.f32 %v40, %v132
  %v134 = vpop.f32.mrf.mxu0
  %135 = vmatprep.mubr.bf16.mxu0 0
  %136 = vmatmul.mubr.bf16.gmra.mxu0 %v73
  %v137 = vpop.f32.mrf.mxu0
  %v138 = vadd.f32 %v40, %v137
  %v139 = vpop.f32.mrf.mxu0
  %v140 = vpop.f32.mrf.mxu0
  %v141 = vadd.f32 %v40, %v140
  %v142 = vpop.f32.mrf.mxu0
  %143 = vdwg.mxu0
  %v144 = vld [vmem:[%s2] sm:$0xf]
  %v145 = vld [vmem:[%s2 + $0x4] sm:$0xf]
  %v146 = vld [vmem:[%s2 + $0x8] sm:$0xf]
  %v147 = vld [vmem:[%s2 + $0xc] sm:$0xf]
  %v152 = vunpack.c.l.b16 %v144
  %v153 = vunpack.c.l.b16 %v145
  %v154 = vunpack.c.l.b16 %v146
  %v155 = vunpack.c.l.b16 %v147
  %v156 = vpack.c.b16 %v153, %v152
  %v157 = vpack.c.b16 %v155, %v154
  %vm160 = vcmask 261120
  %v162 = vsel %vm160, 0, 0
  %164 = vmatprep.subr.bf16.mxu0 0
  %165 = vmatpush1.bf16.msra.mxu0 0
  %166 = vmatprep.subr.bf16.mxu0 0
  %167 = vmatpush1.bf16.msra.mxu0 0
  %168 = vmatprep.subr.bf16.mxu0 0
  %169 = vmatpush1.bf16.msra.mxu0 0
  %170 = vmatprep.subr.bf16.mxu0 0
  %171 = vmatpush1.bf16.msra.mxu0 0
  %172 = vmatprep.subr.bf16.mxu0 0
  %173 = vmatpush1.bf16.msra.mxu0 0
  %174 = vmatprep.subr.bf16.mxu0 0
  %175 = vmatpush1.bf16.msra.mxu0 0
  %176 = vmatprep.subr.bf16.mxu0 0
  %177 = vmatpush1.bf16.msra.mxu0 %v157
  %178 = vmatprep.subr.bf16.mxu0 0
  %179 = vmatpush1.bf16.msra.mxu0 %v156
  %180 = vmatprep.subr.bf16.mxu0 0
  %181 = vmatpush2.bf16.msra.mxu0 0
  %182 = vmatprep.subr.bf16.mxu0 0
  %183 = vmatpush2.bf16.msra.mxu0 0
  %184 = vmatprep.subr.bf16.mxu0 0
  %185 = vmatpush2.bf16.msra.mxu0 0
  %186 = vmatprep.subr.bf16.mxu0 0
  %187 = vmatpush2.bf16.msra.mxu0 0
  %188 = vmatprep.subr.bf16.mxu0 0
  %189 = vmatpush2.bf16.msra.mxu0 0
  %190 = vmatprep.subr.bf16.mxu0 0
  %191 = vmatpush2.bf16.msra.mxu0 0
  %192 = vmatprep.subr.bf16.mxu0 0
  %193 = vmatpush2.bf16.msra.mxu0 0
  %194 = vmatprep.subr.bf16.mxu0 0
  %195 = vmatpush2.bf16.msra.mxu0 0
  %196 = vmatprep.mubr.bf16.mxu0 0
  %197 = vmatmul.mubr.bf16.gmra.mxu0 %v162
  %v198 = vpop.f32.mrf.mxu0
  %v199 = vadd.f32 0.0, %v198
  %v200 = vpop.f32.mrf.mxu0
  %v201 = vpop.f32.mrf.mxu0
  %v202 = vpop.f32.mrf.mxu0
  %203 = vdwg.mxu0
  %v204 = vadd.f32 %v114, %v199
  %v205 = vxor.u32 %v204, 2147483648
  %v206 = vmul.f32 %v205, 1.442695
  %v207 = vpow.pop %v206
  %v208 = vadd.f32 %v207, 1.0
  %v209 = vrcp.pop %v208
  %v210 = vmul.f32 1.0, %v209
  %v211 = vtanh.pop %v204
  %v212 = vmul.f32 %v210, 0.0
  %214 = vrot.lane.b32.xlu0 %v211, 64
  %v215 = vpop.permute.xlu0 %214
  %v217 = vmul.f32 %v210, %v215
  %219 = vrot.lane.b32.xlu0 %v217, 32
  %v220 = vpop.permute.xlu0 %219
  %v222 = vadd.f32 %v212, %v220
  %v223 = vtanh.pop %v222
  %225 = vrot.lane.b32.xlu0 %v223, 64
  %v226 = vpop.permute.xlu0 %225
  %v228 = vmul.f32 %v210, %v226
  %v229 = vpack.c.bf16 %v228, %v228
  %231 = vrot.lane.b32.xlu0 %v229, 32
  %v232 = vpop.permute.xlu0 %231
  %v234 = vsel %vm160, %v232, 0
  %236 = vmatprep.subr.bf16.mxu0 0
  %237 = vmatpush1.bf16.msra.mxu0 0
  %238 = vmatprep.subr.bf16.mxu0 0
  %239 = vmatpush1.bf16.msra.mxu0 0
  %240 = vmatprep.subr.bf16.mxu0 0
  %241 = vmatpush1.bf16.msra.mxu0 0
  %242 = vmatprep.subr.bf16.mxu0 0
  %243 = vmatpush1.bf16.msra.mxu0 0
  %244 = vmatprep.subr.bf16.mxu0 0
  %245 = vmatpush1.bf16.msra.mxu0 0
  %246 = vmatprep.subr.bf16.mxu0 0
  %247 = vmatpush1.bf16.msra.mxu0 0
  %248 = vmatprep.subr.bf16.mxu0 0
  %249 = vmatpush1.bf16.msra.mxu0 %v157
  %250 = vmatprep.subr.bf16.mxu0 0
  %251 = vmatpush1.bf16.msra.mxu0 %v156
  %252 = vmatprep.subr.bf16.mxu0 0
  %253 = vmatpush2.bf16.msra.mxu0 0
  %254 = vmatprep.subr.bf16.mxu0 0
  %255 = vmatpush2.bf16.msra.mxu0 0
  %256 = vmatprep.subr.bf16.mxu0 0
  %257 = vmatpush2.bf16.msra.mxu0 0
  %258 = vmatprep.subr.bf16.mxu0 0
  %259 = vmatpush2.bf16.msra.mxu0 0
  %260 = vmatprep.subr.bf16.mxu0 0
  %261 = vmatpush2.bf16.msra.mxu0 0
  %262 = vmatprep.subr.bf16.mxu0 0
  %263 = vmatpush2.bf16.msra.mxu0 0
  %264 = vmatprep.subr.bf16.mxu0 0
  %265 = vmatpush2.bf16.msra.mxu0 0
  %266 = vmatprep.subr.bf16.mxu0 0
  %267 = vmatpush2.bf16.msra.mxu0 0
  %268 = vmatprep.mubr.bf16.mxu0 0
  %269 = vmatmul.mubr.bf16.gmra.mxu0 %v234
  %v270 = vpop.f32.mrf.mxu0
  %v271 = vadd.f32 0.0, %v270
  %v272 = vpop.f32.mrf.mxu0
  %v273 = vpop.f32.mrf.mxu0
  %v274 = vpop.f32.mrf.mxu0
  %275 = vdwg.mxu0
  %v276 = vadd.f32 %v117, %v271
  %v277 = vxor.u32 %v276, 2147483648
  %v278 = vmul.f32 %v277, 1.442695
  %v279 = vpow.pop %v278
  %v280 = vadd.f32 %v279, 1.0
  %v281 = vrcp.pop %v280
  %v282 = vmul.f32 1.0, %v281
  %v283 = vtanh.pop %v276
  %v284 = vmul.f32 %v282, %v222
  %286 = vrot.lane.b32.xlu0 %v283, 64
  %v287 = vpop.permute.xlu0 %286
  %v289 = vmul.f32 %v282, %v287
  %291 = vrot.lane.b32.xlu0 %v289, 32
  %v292 = vpop.permute.xlu0 %291
  %v294 = vadd.f32 %v284, %v292
  %v295 = vtanh.pop %v294
  %297 = vrot.lane.b32.xlu0 %v295, 64
  %v298 = vpop.permute.xlu0 %297
  %v300 = vmul.f32 %v282, %v298
  %v301 = vpack.c.bf16 %v300, %v300
  %303 = vrot.lane.b32.xlu0 %v301, 32
  %v304 = vpop.permute.xlu0 %303
  %v306 = vsel %vm160, %v304, 0
  %308 = vmatprep.subr.bf16.mxu0 0
  %309 = vmatpush1.bf16.msra.mxu0 0
  %310 = vmatprep.subr.bf16.mxu0 0
  %311 = vmatpush1.bf16.msra.mxu0 0
  %312 = vmatprep.subr.bf16.mxu0 0
  %313 = vmatpush1.bf16.msra.mxu0 0
  %314 = vmatprep.subr.bf16.mxu0 0
  %315 = vmatpush1.bf16.msra.mxu0 0
  %316 = vmatprep.subr.bf16.mxu0 0
  %317 = vmatpush1.bf16.msra.mxu0 0
  %318 = vmatprep.subr.bf16.mxu0 0
  %319 = vmatpush1.bf16.msra.mxu0 0
  %320 = vmatprep.subr.bf16.mxu0 0
  %321 = vmatpush1.bf16.msra.mxu0 %v157
  %322 = vmatprep.subr.bf16.mxu0 0
  %323 = vmatpush1.bf16.msra.mxu0 %v156
  %324 = vmatprep.subr.bf16.mxu0 0
  %325 = vmatpush2.bf16.msra.mxu0 0
  %326 = vmatprep.subr.bf16.mxu0 0
  %327 = vmatpush2.bf16.msra.mxu0 0
  %328 = vmatprep.subr.bf16.mxu0 0
  %329 = vmatpush2.bf16.msra.mxu0 0
  %330 = vmatprep.subr.bf16.mxu0 0
  %331 = vmatpush2.bf16.msra.mxu0 0
  %332 = vmatprep.subr.bf16.mxu0 0
  %333 = vmatpush2.bf16.msra.mxu0 0
  %334 = vmatprep.subr.bf16.mxu0 0
  %335 = vmatpush2.bf16.msra.mxu0 0
  %336 = vmatprep.subr.bf16.mxu0 0
  %337 = vmatpush2.bf16.msra.mxu0 0
  %338 = vmatprep.subr.bf16.mxu0 0
  %339 = vmatpush2.bf16.msra.mxu0 0
  %340 = vmatprep.mubr.bf16.mxu0 0
  %341 = vmatmul.mubr.bf16.gmra.mxu0 %v306
  %v342 = vpop.f32.mrf.mxu0
  %v343 = vadd.f32 0.0, %v342
  %v344 = vpop.f32.mrf.mxu0
  %v345 = vpop.f32.mrf.mxu0
  %v346 = vpop.f32.mrf.mxu0
  %347 = vdwg.mxu0
  %v348 = vadd.f32 %v122, %v343
  %v349 = vxor.u32 %v348, 2147483648
  %v350 = vmul.f32 %v349, 1.442695
  %v351 = vpow.pop %v350
  %v352 = vadd.f32 %v351, 1.0
  %v353 = vrcp.pop %v352
  %v354 = vmul.f32 1.0, %v353
  %v355 = vtanh.pop %v348
  %v356 = vmul.f32 %v354, %v294
  %358 = vrot.lane.b32.xlu0 %v355, 64
  %v359 = vpop.permute.xlu0 %358
  %v361 = vmul.f32 %v354, %v359
  %363 = vrot.lane.b32.xlu0 %v361, 32
  %v364 = vpop.permute.xlu0 %363
  %v366 = vadd.f32 %v356, %v364
  %v367 = vtanh.pop %v366
  %369 = vrot.lane.b32.xlu0 %v367, 64
  %v370 = vpop.permute.xlu0 %369
  %v372 = vmul.f32 %v354, %v370
  %v373 = vpack.c.bf16 %v372, %v372
  %375 = vrot.lane.b32.xlu0 %v373, 32
  %v376 = vpop.permute.xlu0 %375
  %v378 = vsel %vm160, %v376, 0
  %380 = vmatprep.subr.bf16.mxu0 0
  %381 = vmatpush1.bf16.msra.mxu0 0
  %382 = vmatprep.subr.bf16.mxu0 0
  %383 = vmatpush1.bf16.msra.mxu0 0
  %384 = vmatprep.subr.bf16.mxu0 0
  %385 = vmatpush1.bf16.msra.mxu0 0
  %386 = vmatprep.subr.bf16.mxu0 0
  %387 = vmatpush1.bf16.msra.mxu0 0
  %388 = vmatprep.subr.bf16.mxu0 0
  %389 = vmatpush1.bf16.msra.mxu0 0
  %390 = vmatprep.subr.bf16.mxu0 0
  %391 = vmatpush1.bf16.msra.mxu0 0
  %392 = vmatprep.subr.bf16.mxu0 0
  %393 = vmatpush1.bf16.msra.mxu0 %v157
  %394 = vmatprep.subr.bf16.mxu0 0
  %395 = vmatpush1.bf16.msra.mxu0 %v156
  %396 = vmatprep.subr.bf16.mxu0 0
  %397 = vmatpush2.bf16.msra.mxu0 0
  %398 = vmatprep.subr.bf16.mxu0 0
  %399 = vmatpush2.bf16.msra.mxu0 0
  %400 = vmatprep.subr.bf16.mxu0 0
  %401 = vmatpush2.bf16.msra.mxu0 0
  %402 = vmatprep.subr.bf16.mxu0 0
  %403 = vmatpush2.bf16.msra.mxu0 0
  %404 = vmatprep.subr.bf16.mxu0 0
  %405 = vmatpush2.bf16.msra.mxu0 0
  %406 = vmatprep.subr.bf16.mxu0 0
  %407 = vmatpush2.bf16.msra.mxu0 0
  %408 = vmatprep.subr.bf16.mxu0 0
  %409 = vmatpush2.bf16.msra.mxu0 0
  %410 = vmatprep.subr.bf16.mxu0 0
  %411 = vmatpush2.bf16.msra.mxu0 0
  %412 = vmatprep.mubr.bf16.mxu0 0
  %413 = vmatmul.mubr.bf16.gmra.mxu0 %v378
  %v414 = vpop.f32.mrf.mxu0
  %v415 = vadd.f32 0.0, %v414
  %v416 = vpop.f32.mrf.mxu0
  %v417 = vpop.f32.mrf.mxu0
  %v418 = vpop.f32.mrf.mxu0
  %419 = vdwg.mxu0
  %v420 = vadd.f32 %v125, %v415
  %v421 = vxor.u32 %v420, 2147483648
  %v422 = vmul.f32 %v421, 1.442695
  %v423 = vpow.pop %v422
  %v424 = vadd.f32 %v423, 1.0
  %v425 = vrcp.pop %v424
  %v426 = vmul.f32 1.0, %v425
  %v427 = vtanh.pop %v420
  %v428 = vmul.f32 %v426, %v366
  %430 = vrot.lane.b32.xlu0 %v427, 64
  %v431 = vpop.permute.xlu0 %430
  %v433 = vmul.f32 %v426, %v431
  %435 = vrot.lane.b32.xlu0 %v433, 32
  %v436 = vpop.permute.xlu0 %435
  %v438 = vadd.f32 %v428, %v436
  %v439 = vtanh.pop %v438
  %441 = vrot.lane.b32.xlu0 %v439, 64
  %v442 = vpop.permute.xlu0 %441
  %v444 = vmul.f32 %v426, %v442
  %v445 = vpack.c.bf16 %v444, %v444
  %447 = vrot.lane.b32.xlu0 %v445, 32
  %v448 = vpop.permute.xlu0 %447
  %v450 = vsel %vm160, %v448, 0
  %452 = vmatprep.subr.bf16.mxu0 0
  %453 = vmatpush1.bf16.msra.mxu0 0
  %454 = vmatprep.subr.bf16.mxu0 0
  %455 = vmatpush1.bf16.msra.mxu0 0
  %456 = vmatprep.subr.bf16.mxu0 0
  %457 = vmatpush1.bf16.msra.mxu0 0
  %458 = vmatprep.subr.bf16.mxu0 0
  %459 = vmatpush1.bf16.msra.mxu0 0
  %460 = vmatprep.subr.bf16.mxu0 0
  %461 = vmatpush1.bf16.msra.mxu0 0
  %462 = vmatprep.subr.bf16.mxu0 0
  %463 = vmatpush1.bf16.msra.mxu0 0
  %464 = vmatprep.subr.bf16.mxu0 0
  %465 = vmatpush1.bf16.msra.mxu0 %v157
  %466 = vmatprep.subr.bf16.mxu0 0
  %467 = vmatpush1.bf16.msra.mxu0 %v156
  %468 = vmatprep.subr.bf16.mxu0 0
  %469 = vmatpush2.bf16.msra.mxu0 0
  %470 = vmatprep.subr.bf16.mxu0 0
  %471 = vmatpush2.bf16.msra.mxu0 0
  %472 = vmatprep.subr.bf16.mxu0 0
  %473 = vmatpush2.bf16.msra.mxu0 0
  %474 = vmatprep.subr.bf16.mxu0 0
  %475 = vmatpush2.bf16.msra.mxu0 0
  %476 = vmatprep.subr.bf16.mxu0 0
  %477 = vmatpush2.bf16.msra.mxu0 0
  %478 = vmatprep.subr.bf16.mxu0 0
  %479 = vmatpush2.bf16.msra.mxu0 0
  %480 = vmatprep.subr.bf16.mxu0 0
  %481 = vmatpush2.bf16.msra.mxu0 0
  %482 = vmatprep.subr.bf16.mxu0 0
  %483 = vmatpush2.bf16.msra.mxu0 0
  %484 = vmatprep.mubr.bf16.mxu0 0
  %485 = vmatmul.mubr.bf16.gmra.mxu0 %v450
  %v486 = vpop.f32.mrf.mxu0
  %v487 = vadd.f32 0.0, %v486
  %v488 = vpop.f32.mrf.mxu0
  %v489 = vpop.f32.mrf.mxu0
  %v490 = vpop.f32.mrf.mxu0
  %491 = vdwg.mxu0
  %v492 = vadd.f32 %v130, %v487
  %v493 = vxor.u32 %v492, 2147483648
  %v494 = vmul.f32 %v493, 1.442695
  %v495 = vpow.pop %v494
  %v496 = vadd.f32 %v495, 1.0
  %v497 = vrcp.pop %v496
  %v498 = vmul.f32 1.0, %v497
  %v499 = vtanh.pop %v492
  %v500 = vmul.f32 %v498, %v438
  %502 = vrot.lane.b32.xlu0 %v499, 64
  %v503 = vpop.permute.xlu0 %502
  %v505 = vmul.f32 %v498, %v503
  %507 = vrot.lane.b32.xlu0 %v505, 32
  %v508 = vpop.permute.xlu0 %507
  %v510 = vadd.f32 %v500, %v508
  %v511 = vtanh.pop %v510
  %513 = vrot.lane.b32.xlu0 %v511, 64
  %v514 = vpop.permute.xlu0 %513
  %v516 = vmul.f32 %v498, %v514
  %v517 = vpack.c.bf16 %v516, %v516
  %519 = vrot.lane.b32.xlu0 %v517, 32
  %v520 = vpop.permute.xlu0 %519
  %v522 = vsel %vm160, %v520, 0
  %524 = vmatprep.subr.bf16.mxu0 0
  %525 = vmatpush1.bf16.msra.mxu0 0
  %526 = vmatprep.subr.bf16.mxu0 0
  %527 = vmatpush1.bf16.msra.mxu0 0
  %528 = vmatprep.subr.bf16.mxu0 0
  %529 = vmatpush1.bf16.msra.mxu0 0
  %530 = vmatprep.subr.bf16.mxu0 0
  %531 = vmatpush1.bf16.msra.mxu0 0
  %532 = vmatprep.subr.bf16.mxu0 0
  %533 = vmatpush1.bf16.msra.mxu0 0
  %534 = vmatprep.subr.bf16.mxu0 0
  %535 = vmatpush1.bf16.msra.mxu0 0
  %536 = vmatprep.subr.bf16.mxu0 0
  %537 = vmatpush1.bf16.msra.mxu0 %v157
  %538 = vmatprep.subr.bf16.mxu0 0
  %539 = vmatpush1.bf16.msra.mxu0 %v156
  %540 = vmatprep.subr.bf16.mxu0 0
  %541 = vmatpush2.bf16.msra.mxu0 0
  %542 = vmatprep.subr.bf16.mxu0 0
  %543 = vmatpush2.bf16.msra.mxu0 0
  %544 = vmatprep.subr.bf16.mxu0 0
  %545 = vmatpush2.bf16.msra.mxu0 0
  %546 = vmatprep.subr.bf16.mxu0 0
  %547 = vmatpush2.bf16.msra.mxu0 0
  %548 = vmatprep.subr.bf16.mxu0 0
  %549 = vmatpush2.bf16.msra.mxu0 0
  %550 = vmatprep.subr.bf16.mxu0 0
  %551 = vmatpush2.bf16.msra.mxu0 0
  %552 = vmatprep.subr.bf16.mxu0 0
  %553 = vmatpush2.bf16.msra.mxu0 0
  %554 = vmatprep.subr.bf16.mxu0 0
  %555 = vmatpush2.bf16.msra.mxu0 0
  %556 = vmatprep.mubr.bf16.mxu0 0
  %557 = vmatmul.mubr.bf16.gmra.mxu0 %v522
  %v558 = vpop.f32.mrf.mxu0
  %v559 = vadd.f32 0.0, %v558
  %v560 = vpop.f32.mrf.mxu0
  %v561 = vpop.f32.mrf.mxu0
  %v562 = vpop.f32.mrf.mxu0
  %563 = vdwg.mxu0
  %v564 = vadd.f32 %v133, %v559
  %v565 = vxor.u32 %v564, 2147483648
  %v566 = vmul.f32 %v565, 1.442695
  %v567 = vpow.pop %v566
  %v568 = vadd.f32 %v567, 1.0
  %v569 = vrcp.pop %v568
  %v570 = vmul.f32 1.0, %v569
  %v571 = vtanh.pop %v564
  %v572 = vmul.f32 %v570, %v510
  %574 = vrot.lane.b32.xlu0 %v571, 64
  %v575 = vpop.permute.xlu0 %574
  %v577 = vmul.f32 %v570, %v575
  %579 = vrot.lane.b32.xlu0 %v577, 32
  %v580 = vpop.permute.xlu0 %579
  %v582 = vadd.f32 %v572, %v580
  %v583 = vtanh.pop %v582
  %585 = vrot.lane.b32.xlu0 %v583, 64
  %v586 = vpop.permute.xlu0 %585
  %v588 = vmul.f32 %v570, %v586
  %v589 = vpack.c.bf16 %v588, %v588
  %591 = vrot.lane.b32.xlu0 %v589, 32
  %v592 = vpop.permute.xlu0 %591
  %v594 = vsel %vm160, %v592, 0
  %596 = vmatprep.subr.bf16.mxu0 0
  %597 = vmatpush1.bf16.msra.mxu0 0
  %598 = vmatprep.subr.bf16.mxu0 0
  %599 = vmatpush1.bf16.msra.mxu0 0
  %600 = vmatprep.subr.bf16.mxu0 0
  %601 = vmatpush1.bf16.msra.mxu0 0
  %602 = vmatprep.subr.bf16.mxu0 0
  %603 = vmatpush1.bf16.msra.mxu0 0
  %604 = vmatprep.subr.bf16.mxu0 0
  %605 = vmatpush1.bf16.msra.mxu0 0
  %606 = vmatprep.subr.bf16.mxu0 0
  %607 = vmatpush1.bf16.msra.mxu0 0
  %608 = vmatprep.subr.bf16.mxu0 0
  %609 = vmatpush1.bf16.msra.mxu0 %v157
  %610 = vmatprep.subr.bf16.mxu0 0
  %611 = vmatpush1.bf16.msra.mxu0 %v156
  %612 = vmatprep.subr.bf16.mxu0 0
  %613 = vmatpush2.bf16.msra.mxu0 0
  %614 = vmatprep.subr.bf16.mxu0 0
  %615 = vmatpush2.bf16.msra.mxu0 0
  %616 = vmatprep.subr.bf16.mxu0 0
  %617 = vmatpush2.bf16.msra.mxu0 0
  %618 = vmatprep.subr.bf16.mxu0 0
  %619 = vmatpush2.bf16.msra.mxu0 0
  %620 = vmatprep.subr.bf16.mxu0 0
  %621 = vmatpush2.bf16.msra.mxu0 0
  %622 = vmatprep.subr.bf16.mxu0 0
  %623 = vmatpush2.bf16.msra.mxu0 0
  %624 = vmatprep.subr.bf16.mxu0 0
  %625 = vmatpush2.bf16.msra.mxu0 0
  %626 = vmatprep.subr.bf16.mxu0 0
  %627 = vmatpush2.bf16.msra.mxu0 0
  %628 = vmatprep.mubr.bf16.mxu0 0
  %629 = vmatmul.mubr.bf16.gmra.mxu0 %v594
  %v630 = vpop.f32.mrf.mxu0
  %v631 = vadd.f32 0.0, %v630
  %v632 = vpop.f32.mrf.mxu0
  %v633 = vpop.f32.mrf.mxu0
  %v634 = vpop.f32.mrf.mxu0
  %635 = vdwg.mxu0
  %v636 = vadd.f32 %v138, %v631
  %v637 = vxor.u32 %v636, 2147483648
  %v638 = vmul.f32 %v637, 1.442695
  %v639 = vpow.pop %v638
  %v640 = vadd.f32 %v639, 1.0
  %v641 = vrcp.pop %v640
  %v642 = vmul.f32 1.0, %v641
  %v643 = vtanh.pop %v636
  %v644 = vmul.f32 %v642, %v582
  %646 = vrot.lane.b32.xlu0 %v643, 64
  %v647 = vpop.permute.xlu0 %646
  %v649 = vmul.f32 %v642, %v647
  %651 = vrot.lane.b32.xlu0 %v649, 32
  %v652 = vpop.permute.xlu0 %651
  %v654 = vadd.f32 %v644, %v652
  %v655 = vtanh.pop %v654
  %657 = vrot.lane.b32.xlu0 %v655, 64
  %v658 = vpop.permute.xlu0 %657
  %v660 = vmul.f32 %v642, %v658
  %v661 = vpack.c.bf16 %v660, %v660
  %663 = vrot.lane.b32.xlu0 %v661, 32
  %v664 = vpop.permute.xlu0 %663
  %v666 = vsel %vm160, %v664, 0
  %668 = vmatprep.subr.bf16.mxu0 0
  %669 = vmatpush1.bf16.msra.mxu0 0
  %670 = vmatprep.subr.bf16.mxu0 0
  %671 = vmatpush1.bf16.msra.mxu0 0
  %672 = vmatprep.subr.bf16.mxu0 0
  %673 = vmatpush1.bf16.msra.mxu0 0
  %674 = vmatprep.subr.bf16.mxu0 0
  %675 = vmatpush1.bf16.msra.mxu0 0
  %676 = vmatprep.subr.bf16.mxu0 0
  %677 = vmatpush1.bf16.msra.mxu0 0
  %678 = vmatprep.subr.bf16.mxu0 0
  %679 = vmatpush1.bf16.msra.mxu0 0
  %680 = vmatprep.subr.bf16.mxu0 0
  %681 = vmatpush1.bf16.msra.mxu0 %v157
  %682 = vmatprep.subr.bf16.mxu0 0
  %683 = vmatpush1.bf16.msra.mxu0 %v156
  %684 = vmatprep.subr.bf16.mxu0 0
  %685 = vmatpush2.bf16.msra.mxu0 0
  %686 = vmatprep.subr.bf16.mxu0 0
  %687 = vmatpush2.bf16.msra.mxu0 0
  %688 = vmatprep.subr.bf16.mxu0 0
  %689 = vmatpush2.bf16.msra.mxu0 0
  %690 = vmatprep.subr.bf16.mxu0 0
  %691 = vmatpush2.bf16.msra.mxu0 0
  %692 = vmatprep.subr.bf16.mxu0 0
  %693 = vmatpush2.bf16.msra.mxu0 0
  %694 = vmatprep.subr.bf16.mxu0 0
  %695 = vmatpush2.bf16.msra.mxu0 0
  %696 = vmatprep.subr.bf16.mxu0 0
  %697 = vmatpush2.bf16.msra.mxu0 0
  %698 = vmatprep.subr.bf16.mxu0 0
  %699 = vmatpush2.bf16.msra.mxu0 0
  %700 = vmatprep.mubr.bf16.mxu0 0
  %701 = vmatmul.mubr.bf16.gmra.mxu0 %v666
  %v702 = vpop.f32.mrf.mxu0
  %v703 = vadd.f32 0.0, %v702
  %v704 = vpop.f32.mrf.mxu0
  %v705 = vpop.f32.mrf.mxu0
  %v706 = vpop.f32.mrf.mxu0
  %707 = vdwg.mxu0
  %v708 = vadd.f32 %v141, %v703
  %v709 = vxor.u32 %v708, 2147483648
  %v710 = vmul.f32 %v709, 1.442695
  %v711 = vpow.pop %v710
  %v712 = vadd.f32 %v711, 1.0
  %v713 = vrcp.pop %v712
  %v714 = vmul.f32 1.0, %v713
  %v715 = vtanh.pop %v708
  %v716 = vmul.f32 %v714, %v654
  %718 = vrot.lane.b32.xlu0 %v715, 64
  %v719 = vpop.permute.xlu0 %718
  %v721 = vmul.f32 %v714, %v719
  %723 = vrot.lane.b32.xlu0 %v721, 32
  %v724 = vpop.permute.xlu0 %723
  %v726 = vadd.f32 %v716, %v724
  %v727 = vtanh.pop %v726
  %729 = vrot.lane.b32.xlu0 %v727, 64
  %v730 = vpop.permute.xlu0 %729
  %v732 = vmul.f32 %v714, %v730
  %v733 = vld [vmem:[%s4] sm:$0x1]
  %v735 = vlaneseq
  %v736 = vshrl.u32 %v735, 7
  %v737 = vsub.s32 0, %v736
  %v738 = vrot.slane %v733, %v737
  %739 = vrot.lane.b32.xlu0 %v738, 96
  %v740 = vpop.permute.xlu0 %739
  %v742 = vmul.f32 %v228, %v740
  %v743 = vmul.f32 %v300, %v740
  %v744 = vmul.f32 %v372, %v740
  %v745 = vmul.f32 %v444, %v740
  %v746 = vmul.f32 %v516, %v740
  %v747 = vmul.f32 %v588, %v740
  %v748 = vmul.f32 %v660, %v740
  %v749 = vmul.f32 %v732, %v740
  %758 = vrot.lane.b32.xlu0 %v742, 32
  %v759 = vpop.permute.xlu0 %758
  %760 = vrot.lane.b32.xlu0 %v743, 32
  %v761 = vpop.permute.xlu0 %760
  %762 = vrot.lane.b32.xlu0 %v744, 32
  %v763 = vpop.permute.xlu0 %762
  %764 = vrot.lane.b32.xlu0 %v745, 32
  %v765 = vpop.permute.xlu0 %764
  %766 = vrot.lane.b32.xlu0 %v746, 32
  %v767 = vpop.permute.xlu0 %766
  %768 = vrot.lane.b32.xlu0 %v747, 32
  %v769 = vpop.permute.xlu0 %768
  %770 = vrot.lane.b32.xlu0 %v748, 32
  %v771 = vpop.permute.xlu0 %770
  %772 = vrot.lane.b32.xlu0 %v749, 32
  %v773 = vpop.permute.xlu0 %772
  %v782 = vsel %vm160, %v759, 0.0
  %783 = vadd.xlane.f32.xlu0 %v782
  %v784 = vpop.xlane.xlu0 %783
  %v785 = vsel %vm160, %v761, 0.0
  %786 = vadd.xlane.f32.xlu0 %v785
  %v787 = vpop.xlane.xlu0 %786
  %v788 = vsel %vm160, %v763, 0.0
  %789 = vadd.xlane.f32.xlu0 %v788
  %v790 = vpop.xlane.xlu0 %789
  %v791 = vsel %vm160, %v765, 0.0
  %792 = vadd.xlane.f32.xlu0 %v791
  %v793 = vpop.xlane.xlu0 %792
  %v794 = vsel %vm160, %v767, 0.0
  %795 = vadd.xlane.f32.xlu0 %v794
  %v796 = vpop.xlane.xlu0 %795
  %v797 = vsel %vm160, %v769, 0.0
  %798 = vadd.xlane.f32.xlu0 %v797
  %v799 = vpop.xlane.xlu0 %798
  %v800 = vsel %vm160, %v771, 0.0
  %801 = vadd.xlane.f32.xlu0 %v800
  %v802 = vpop.xlane.xlu0 %801
  %v803 = vsel %vm160, %v773, 0.0
  %804 = vadd.xlane.f32.xlu0 %v803
  %v805 = vpop.xlane.xlu0 %804
  %v806 = vld [vmem:[#allocation2] sm:$0x1]
  %v808 = vlaneseq
  %v809 = vshrl.u32 %v808, 7
  %v810 = vsub.s32 0, %v809
  %v811 = vrot.slane %v806, %v810
  %v813 = vadd.f32 %v784, %v811
  %v814 = vadd.f32 %v787, %v811
  %v815 = vadd.f32 %v790, %v811
  %v816 = vadd.f32 %v793, %v811
  %v817 = vadd.f32 %v796, %v811
  %v818 = vadd.f32 %v799, %v811
  %v819 = vadd.f32 %v802, %v811
  %v820 = vadd.f32 %v805, %v811
  %vm821 = vcmask 7168
  %822 = vst.msk [vmem:[%s6] sm:$0xff] %vm821, %v813
  %823 = vst.msk [vmem:[%s6 + $0x8] sm:$0xff] %vm821, %v814
  %824 = vst.msk [vmem:[%s6 + $0x10] sm:$0xff] %vm821, %v815
  %825 = vst.msk [vmem:[%s6 + $0x18] sm:$0xff] %vm821, %v816
  %826 = vst.msk [vmem:[%s6 + $0x20] sm:$0xff] %vm821, %v817
  %827 = vst.msk [vmem:[%s6 + $0x28] sm:$0xff] %vm821, %v818
  %828 = vst.msk [vmem:[%s6 + $0x30] sm:$0xff] %vm821, %v819
  %829 = vst.msk [vmem:[%s6 + $0x38] sm:$0xff] %vm821, %v820
  // Predicated region
  $region26: #{tpu_custom_call.1} parent=0 // pred_check
    _
  $region27: #{tpu_custom_call.1} parent=0 // pred_check_branch
    %831 = sbr.rel (0) target = $region29
  $region28: #{tpu_custom_call.1} parent=0 // pred_region
    _
  $region29: #{tpu_custom_call.1} parent=0 // pred_fallthru
    _
  // Predicated region
  $region30: #{tpu_custom_call.1} parent=0 // pred_check
    _
  $region31: #{tpu_custom_call.1} parent=0 // pred_check_branch
    %833 = sbr.rel (0) target = $region33
  $region32: #{tpu_custom_call.1} parent=0 // pred_region
    _
  $region33: #{tpu_custom_call.1} parent=0 // pred_fallthru
    _

</llo_original>
